<compile_context>
chip_gen: v5e
topology: v5e:2x2
jax: 0.10.0
libtpu: 0.0.40
codegen_flags: <defaults>
</compile_context>

<pallas_src>
import jax
import jax.numpy as jnp
from jax.experimental import pallas as pl
from jax.experimental.pallas import tpu as pltpu

EPS = 1e-6


def _round_up(x, m):
    return ((x + m - 1) // m) * m


def _vmem_capacity_bytes():
    try:
        return int(pltpu.get_tpu_info().vmem_capacity_bytes)
    except Exception:
        return 128 << 20  # v5e/v6e default


def _make_kernel(d_real, eps):
    inv_d = 1.0 / float(d_real)
    inv_dm1 = 1.0 / float(max(d_real - 1, 1))

    def kernel(x_ref, wt_ref, b_ref, gamma_ref, beta_ref, o_ref):
        xin = x_ref[...]                                  # (TM, Dp), caller dtype
        x = xin.astype(jnp.float32)                       # residual/LN math in f32
        # layer(x) = x @ W^T + b; wt_ref already holds W^T (pre-transposed in the
        # wrapper). MXU operands in wt dtype (bf16 default), f32 accumulation.
        h = jnp.dot(xin.astype(wt_ref.dtype), wt_ref[...],
                    preferred_element_type=jnp.float32) + b_ref[...]
        # dropout: eval mode / p=0 -> identity, so the residual is exact.
        # TODO(synk): training-mode dropout (pltpu.prng_seed + prng_random_bits)
        # if a nonzero drop_ratio in train mode is ever required.
        z = x + h
        # Single-pass mean/variance: sum and sum-of-squares together (the two XLU
        # reductions can overlap). Mild f32 cancellation risk is acceptable at
        # LayerNorm activation scales. Padded lanes (>= d_real) are exact zeros,
        # so the sums only see the real D columns.
        s1 = jnp.sum(z, axis=-1, keepdims=True)
        s2 = jnp.sum(z * z, axis=-1, keepdims=True)
        mean = s1 * inv_d
        # PyTorch x.std(-1) is the unbiased std (divide by N-1).
        var = jnp.maximum((s2 - s1 * mean) * inv_dm1, 0.0)
        s = jnp.sqrt(var) + eps
        # EUP approximate reciprocal + one Newton step -> ~f32-exact, off the VALU.
        inv = pl.reciprocal(s, approx=True)
        inv = inv * (2.0 - s * inv)
        o_ref[...] = (gamma_ref[...] * (z - mean) * inv
                      + beta_ref[...]).astype(o_ref.dtype)

    return kernel


def residual_block(x, w, b, gamma, beta, *, tm=None,
                   matmul_dtype=jnp.bfloat16, out_dtype=None, eps=EPS):
    """x: (B, S, D); w: (D, D) PyTorch Linear weight; b, gamma, beta: (D,).

    Returns (B, S, D) in `out_dtype` (defaults to x.dtype). Residual + LayerNorm
    math is always f32; `matmul_dtype` only affects the MXU operands.
    """
    B, S, D = x.shape
    M = B * S
    out_dtype = x.dtype if out_dtype is None else out_dtype

    # Keep the caller's activation dtype for HBM I/O (bf16 callers stay bf16).
    x2 = x.reshape(M, D)

    # Pre-transpose the weight once (contraction dim first) -> no in-kernel w.T.
    wt = jnp.asarray(w).T.astype(matmul_dtype)
    b2 = jnp.asarray(b, dtype=jnp.float32).reshape(1, D)
    g2 = jnp.asarray(gamma, dtype=jnp.float32).reshape(1, D)
    be2 = jnp.asarray(beta, dtype=jnp.float32).reshape(1, D)

    # Lane-pad small d_model to 128 so output stores are lane-dense (unmasked vst).
    # Padded columns are exact zeros everywhere (x, W^T, bias, gamma, beta), so the
    # kernel only needs the real D for the mean/var divides; no in-kernel masking.
    Dp = 128 if D < 128 else D
    if Dp != D:
        pc = Dp - D
        x2 = jnp.pad(x2, ((0, 0), (0, pc)))
        wt = jnp.pad(wt, ((0, pc), (0, pc)))
        b2 = jnp.pad(b2, ((0, 0), (0, pc)))
        g2 = jnp.pad(g2, ((0, 0), (0, pc)))
        be2 = jnp.pad(be2, ((0, 0), (0, pc)))

    # Per-generation VMEM budget: ~48 MiB ceiling on v7x (64 MiB physical),
    # ~96 MiB on v5e/v6e (128 MiB physical).
    vmem_cap = _vmem_capacity_bytes()
    vmem_ceiling = (vmem_cap * 3) // 4

    in_item = jnp.dtype(x2.dtype).itemsize
    out_item = jnp.dtype(out_dtype).itemsize
    w_bytes = Dp * Dp * jnp.dtype(matmul_dtype).itemsize   # single-buffered W^T
    fixed_bytes = w_bytes + 3 * Dp * 4 + (4 << 20)          # + params + margin
    # TODO(synk): if w_bytes alone exceeds vmem_ceiling (d_model ~>4k bf16 on v7x,
    # ~>5-6k on v5e/v6e), stream W^T in K/N blocks via an inner pltpu.emit_pipeline
    # accumulating into a (tm, Dp) f32 scratch instead of keeping it resident.

    if tm is None:
        tm = 1024 if vmem_cap > (64 << 20) else 256          # big tiles on 128 MiB chips
    tm = max(8, _round_up(min(int(tm), _round_up(M, 8)), 8))
    while tm > 8 and fixed_bytes + 2 * tm * Dp * (in_item + out_item) > vmem_ceiling:
        tm //= 2
    tm = max(8, _round_up(tm, 8))

    num_blocks = pl.cdiv(M, tm)    # ragged last block handled by Pallas (no pad/slice)
    kernel = _make_kernel(D, eps)
    vmem_limit = int(max(vmem_ceiling, 16 << 20))

    def _call(single_buffer_consts):
        const_kw = dict(pipeline_mode=pl.Buffered(1)) if single_buffer_consts else {}
        in_specs = [
            pl.BlockSpec((tm, Dp), lambda i: (i, 0)),              # activation tile
            pl.BlockSpec((Dp, Dp), lambda i: (0, 0), **const_kw),  # W^T, resident
            pl.BlockSpec((1, Dp), lambda i: (0, 0), **const_kw),   # bias
            pl.BlockSpec((1, Dp), lambda i: (0, 0), **const_kw),   # gamma
            pl.BlockSpec((1, Dp), lambda i: (0, 0), **const_kw),   # beta
        ]
        return pl.pallas_call(
            kernel,
            out_shape=jax.ShapeDtypeStruct((M, Dp), out_dtype),
            grid=(num_blocks,),
            in_specs=in_specs,
            out_specs=pl.BlockSpec((tm, Dp), lambda i: (i, 0)),
            compiler_params=pltpu.CompilerParams(
                dimension_semantics=("parallel",),                 # megacore on v7x
                vmem_limit_bytes=vmem_limit,
            ),
        )(x2, wt, b2, g2, be2)

    try:
        out2 = _call(True)
    except Exception:
        # pl.Buffered(1) not accepted by this jax/Mosaic version: fall back to the
        # default double-buffered constants (costs one extra resident-W^T copy).
        out2 = _call(False)

    if Dp != D:
        out2 = out2[:, :D]
    return out2.reshape(B, S, D)


def reference(x, w, b, gamma, beta):
    h = jnp.einsum("bsd,ed->bse", x, w) + b
    z = x + h
    mean = jnp.mean(z, axis=-1, keepdims=True)
    var = jnp.sum((z - mean) ** 2, axis=-1, keepdims=True) / (z.shape[-1] - 1)
    std = jnp.sqrt(var)
    return gamma * (z - mean) / (std + EPS) + beta


if __name__ == "__main__":
    B, S, D = 2, 8, 32  # batch, seq, d_model
    key = jax.random.PRNGKey(0)
    kx, kw, kb = jax.random.split(key, 3)

    x = jax.random.normal(kx, (B, S, D), dtype=jnp.float32)
    # deterministic nn.Linear(d_model, d_model) init: U(-1/sqrt(D), 1/sqrt(D))
    bound = 1.0 / (D ** 0.5)
    w = jax.random.uniform(kw, (D, D), jnp.float32, -bound, bound)
    b = jax.random.uniform(kb, (D,), jnp.float32, -bound, bound)
    gamma = jnp.ones((D,), jnp.float32)
    beta = jnp.zeros((D,), jnp.float32)

    ref = reference(x, w, b, gamma, beta)

    # f32 MXU path: tight tolerance vs. the f32 reference.
    out_f32 = jax.block_until_ready(
        residual_block(x, w, b, gamma, beta, matmul_dtype=jnp.float32))
    assert out_f32.shape == (B, S, D)
    assert jnp.allclose(out_f32, ref, atol=1e-4, rtol=1e-4), "f32 path mismatch"

    # default bf16 MXU path (residual/LN still f32): looser tolerance.
    out_bf16 = jax.block_until_ready(residual_block(x, w, b, gamma, beta))
    assert out_bf16.shape == (B, S, D)
    assert jnp.allclose(out_bf16, ref, atol=3e-2, rtol=3e-2), "bf16 path mismatch"

    # ragged-M path (M % tm != 0) — exercises the no-pad / no-slice grid handling.
    B2, S2 = 2, 10  # M = 20, tm forced to 8 -> last row block is partial
    xr = jax.random.normal(jax.random.PRNGKey(1), (B2, S2, D), dtype=jnp.float32)
    out_r = jax.block_until_ready(
        residual_block(xr, w, b, gamma, beta, tm=8, matmul_dtype=jnp.float32))
    ref_r = reference(xr, w, b, gamma, beta)
    assert jnp.allclose(out_r, ref_r, atol=1e-4, rtol=1e-4), "ragged-M path mismatch"

    print("KERNEL_OK")
</pallas_src>

<mosaic_0001>
module attributes {stable_mosaic.version = 11 : i64} {
  func.func @kernel(%arg0: i32, %arg1: memref<16x128xf32, #tpu.memory_space<vmem>>, %arg2: memref<128x128xf32, #tpu.memory_space<vmem>>, %arg3: memref<1x128xf32, #tpu.memory_space<vmem>>, %arg4: memref<1x128xf32, #tpu.memory_space<vmem>>, %arg5: memref<1x128xf32, #tpu.memory_space<vmem>>, %arg6: memref<16x128xf32, #tpu.memory_space<vmem>>) attributes {dimension_semantics = [#tpu.dimension_semantics<parallel>], iteration_bounds = array<i64: 1>, scalar_prefetch = 0 : i64, scratch_operands = 0 : i64, tpu.core_type = #tpu.core_type<tc>, window_params = [{transform_indices = @transform_0, window_bounds = array<i64: 16, 128>}, {pipeline_mode = #tpu.pipeline_mode<synchronous>, transform_indices = @transform_1, window_bounds = array<i64: 128, 128>}, {pipeline_mode = #tpu.pipeline_mode<synchronous>, transform_indices = @transform_2, window_bounds = array<i64: 1, 128>}, {pipeline_mode = #tpu.pipeline_mode<synchronous>, transform_indices = @transform_3, window_bounds = array<i64: 1, 128>}, {pipeline_mode = #tpu.pipeline_mode<synchronous>, transform_indices = @transform_4, window_bounds = array<i64: 1, 128>}, {transform_indices = @transform_5, window_bounds = array<i64: 16, 128>}]} {
    %c0 = arith.constant 0 : index
    %c0_0 = arith.constant 0 : index
    %0 = vector.load %arg1[%c0, %c0_0] : memref<16x128xf32, #tpu.memory_space<vmem>>, vector<16x128xf32>
    %c0_1 = arith.constant 0 : index
    %c0_2 = arith.constant 0 : index
    %1 = vector.load %arg2[%c0_1, %c0_2] : memref<128x128xf32, #tpu.memory_space<vmem>>, vector<128x128xf32>
    %cst = arith.constant dense<0.000000e+00> : vector<16x128xf32>
    %2 = tpu.matmul %0, %1, %cst {dimension_numbers = #tpu.dot_dimension_numbers<[1], [0], [0], [1], [0, 0, 1, 1], [], []>} : vector<16x128xf32>, vector<128x128xf32>, vector<16x128xf32> -> vector<16x128xf32>
    %c0_3 = arith.constant 0 : index
    %c0_4 = arith.constant 0 : index
    %3 = vector.load %arg3[%c0_3, %c0_4] : memref<1x128xf32, #tpu.memory_space<vmem>>, vector<1x128xf32>
    %4 = vector.broadcast %3 : vector<1x128xf32> to vector<16x128xf32>
    %5 = arith.addf %2, %4 : vector<16x128xf32>
    %6 = arith.addf %0, %5 : vector<16x128xf32>
    %cst_5 = arith.constant dense<0.000000e+00> : vector<16xf32>
    %7 = vector.multi_reduction <add>, %6, %cst_5 [1] : vector<16x128xf32> to vector<16xf32>
    %8 = vector.shape_cast %7 : vector<16xf32> to vector<16x1xf32>
    %9 = arith.mulf %6, %6 : vector<16x128xf32>
    %cst_6 = arith.constant dense<0.000000e+00> : vector<16xf32>
    %10 = vector.multi_reduction <add>, %9, %cst_6 [1] : vector<16x128xf32> to vector<16xf32>
    %11 = vector.shape_cast %10 : vector<16xf32> to vector<16x1xf32>
    %cst_7 = arith.constant 3.125000e-02 : f32
    %12 = vector.broadcast %cst_7 : f32 to vector<16x1xf32>
    %13 = arith.mulf %8, %12 : vector<16x1xf32>
    %14 = arith.mulf %8, %13 : vector<16x1xf32>
    %15 = arith.subf %11, %14 : vector<16x1xf32>
    %cst_8 = arith.constant 0.0322580636 : f32
    %16 = vector.broadcast %cst_8 : f32 to vector<16x1xf32>
    %17 = arith.mulf %15, %16 : vector<16x1xf32>
    %cst_9 = arith.constant 0.000000e+00 : f32
    %18 = vector.broadcast %cst_9 : f32 to vector<16x1xf32>
    %19 = arith.maximumf %17, %18 : vector<16x1xf32>
    %20 = math.sqrt %19 : vector<16x1xf32>
    %cst_10 = arith.constant 9.99999997E-7 : f32
    %21 = vector.broadcast %cst_10 : f32 to vector<16x1xf32>
    %22 = arith.addf %20, %21 : vector<16x1xf32>
    %23 = tpu.reciprocal %22 {approx = true} : vector<16x1xf32> -> vector<16x1xf32>
    %24 = arith.mulf %22, %23 : vector<16x1xf32>
    %cst_11 = arith.constant 2.000000e+00 : f32
    %25 = vector.broadcast %cst_11 : f32 to vector<16x1xf32>
    %26 = arith.subf %25, %24 : vector<16x1xf32>
    %27 = arith.mulf %23, %26 : vector<16x1xf32>
    %c0_12 = arith.constant 0 : index
    %c0_13 = arith.constant 0 : index
    %28 = vector.load %arg4[%c0_12, %c0_13] : memref<1x128xf32, #tpu.memory_space<vmem>>, vector<1x128xf32>
    %29 = vector.broadcast %13 : vector<16x1xf32> to vector<16x128xf32>
    %30 = arith.subf %6, %29 : vector<16x128xf32>
    %31 = vector.broadcast %28 : vector<1x128xf32> to vector<16x128xf32>
    %32 = arith.mulf %31, %30 : vector<16x128xf32>
    %33 = vector.broadcast %27 : vector<16x1xf32> to vector<16x128xf32>
    %34 = arith.mulf %32, %33 : vector<16x128xf32>
    %c0_14 = arith.constant 0 : index
    %c0_15 = arith.constant 0 : index
    %35 = vector.load %arg5[%c0_14, %c0_15] : memref<1x128xf32, #tpu.memory_space<vmem>>, vector<1x128xf32>
    %36 = vector.broadcast %35 : vector<1x128xf32> to vector<16x128xf32>
    %37 = arith.addf %34, %36 : vector<16x128xf32>
    %c0_16 = arith.constant 0 : index
    %c0_17 = arith.constant 0 : index
    %38 = vector.load %arg6[%c0_16, %c0_17] : memref<16x128xf32, #tpu.memory_space<vmem>>, vector<16x128xf32>
    tpu.vector_store %arg6[%c0_16, %c0_17], %37 {strides = array<i32>} : memref<16x128xf32, #tpu.memory_space<vmem>>, vector<16x128xf32>,
    return
  }
  func.func @transform_0(%arg0: i32) -> (i32, i32) {
    %c0_i32 = arith.constant 0 : i32
    %c0_i32_0 = arith.constant 0 : i32
    return %arg0, %c0_i32 : i32, i32
  }
  func.func @transform_1(%arg0: i32) -> (i32, i32) {
    %c0_i32 = arith.constant 0 : i32
    %c0_i32_0 = arith.constant 0 : i32
    %c0_i32_1 = arith.constant 0 : i32
    return %c0_i32, %c0_i32_0 : i32, i32
  }
  func.func @transform_2(%arg0: i32) -> (i32, i32) {
    %c0_i32 = arith.constant 0 : i32
    %c0_i32_0 = arith.constant 0 : i32
    %c0_i32_1 = arith.constant 0 : i32
    return %c0_i32, %c0_i32_0 : i32, i32
  }
  func.func @transform_3(%arg0: i32) -> (i32, i32) {
    %c0_i32 = arith.constant 0 : i32
    %c0_i32_0 = arith.constant 0 : i32
    %c0_i32_1 = arith.constant 0 : i32
    return %c0_i32, %c0_i32_0 : i32, i32
  }
  func.func @transform_4(%arg0: i32) -> (i32, i32) {
    %c0_i32 = arith.constant 0 : i32
    %c0_i32_0 = arith.constant 0 : i32
    %c0_i32_1 = arith.constant 0 : i32
    return %c0_i32, %c0_i32_0 : i32, i32
  }
  func.func @transform_5(%arg0: i32) -> (i32, i32) {
    %c0_i32 = arith.constant 0 : i32
    %c0_i32_0 = arith.constant 0 : i32
    return %arg0, %c0_i32 : i32, i32
  }
}

module attributes {stable_mosaic.version = 11 : i64} {
  func.func @kernel(%arg0: i32, %arg1: memref<16x128xf32, #tpu.memory_space<vmem>>, %arg2: memref<128x128xf32, #tpu.memory_space<vmem>>, %arg3: memref<1x128xf32, #tpu.memory_space<vmem>>, %arg4: memref<1x128xf32, #tpu.memory_space<vmem>>, %arg5: memref<1x128xf32, #tpu.memory_space<vmem>>, %arg6: memref<16x128xf32, #tpu.memory_space<vmem>>) attributes {dimension_semantics = [#tpu.dimension_semantics<parallel>], iteration_bounds = array<i64: 1>, scalar_prefetch = 0 : i64, scratch_operands = 0 : i64, tpu.core_type = #tpu.core_type<tc>, window_params = [{transform_indices = @transform_0, window_bounds = array<i64: 16, 128>}, {pipeline_mode = #tpu.pipeline_mode<synchronous>, transform_indices = @transform_1, window_bounds = array<i64: 128, 128>}, {pipeline_mode = #tpu.pipeline_mode<synchronous>, transform_indices = @transform_2, window_bounds = array<i64: 1, 128>}, {pipeline_mode = #tpu.pipeline_mode<synchronous>, transform_indices = @transform_3, window_bounds = array<i64: 1, 128>}, {pipeline_mode = #tpu.pipeline_mode<synchronous>, transform_indices = @transform_4, window_bounds = array<i64: 1, 128>}, {transform_indices = @transform_5, window_bounds = array<i64: 16, 128>}]} {
    %c0 = arith.constant 0 : index
    %c0_0 = arith.constant 0 : index
    %0 = vector.load %arg1[%c0, %c0_0] : memref<16x128xf32, #tpu.memory_space<vmem>>, vector<16x128xf32>
    %c0_1 = arith.constant 0 : index
    %c0_2 = arith.constant 0 : index
    %1 = vector.load %arg2[%c0_1, %c0_2] : memref<128x128xf32, #tpu.memory_space<vmem>>, vector<128x128xf32>
    %cst = arith.constant dense<0.000000e+00> : vector<16x128xf32>
    %2 = tpu.matmul %0, %1, %cst {dimension_numbers = #tpu.dot_dimension_numbers<[1], [0], [0], [1], [0, 0, 1, 1], [], []>} : vector<16x128xf32>, vector<128x128xf32>, vector<16x128xf32> -> vector<16x128xf32>
    %c0_3 = arith.constant 0 : index
    %c0_4 = arith.constant 0 : index
    %3 = vector.load %arg3[%c0_3, %c0_4] : memref<1x128xf32, #tpu.memory_space<vmem>>, vector<1x128xf32>
    %4 = vector.broadcast %3 : vector<1x128xf32> to vector<16x128xf32>
    %5 = arith.addf %2, %4 : vector<16x128xf32>
    %6 = arith.addf %0, %5 : vector<16x128xf32>
    %cst_5 = arith.constant dense<0.000000e+00> : vector<16xf32>
    %7 = vector.multi_reduction <add>, %6, %cst_5 [1] : vector<16x128xf32> to vector<16xf32>
    %8 = vector.shape_cast %7 : vector<16xf32> to vector<16x1xf32>
    %9 = arith.mulf %6, %6 : vector<16x128xf32>
    %cst_6 = arith.constant dense<0.000000e+00> : vector<16xf32>
    %10 = vector.multi_reduction <add>, %9, %cst_6 [1] : vector<16x128xf32> to vector<16xf32>
    %11 = vector.shape_cast %10 : vector<16xf32> to vector<16x1xf32>
    %cst_7 = arith.constant 3.125000e-02 : f32
    %12 = vector.broadcast %cst_7 : f32 to vector<16x1xf32>
    %13 = arith.mulf %8, %12 : vector<16x1xf32>
    %14 = arith.mulf %8, %13 : vector<16x1xf32>
    %15 = arith.subf %11, %14 : vector<16x1xf32>
    %cst_8 = arith.constant 0.0322580636 : f32
    %16 = vector.broadcast %cst_8 : f32 to vector<16x1xf32>
    %17 = arith.mulf %15, %16 : vector<16x1xf32>
    %cst_9 = arith.constant 0.000000e+00 : f32
    %18 = vector.broadcast %cst_9 : f32 to vector<16x1xf32>
    %19 = arith.maximumf %17, %18 : vector<16x1xf32>
    %20 = math.sqrt %19 : vector<16x1xf32>
    %cst_10 = arith.constant 9.99999997E-7 : f32
    %21 = vector.broadcast %cst_10 : f32 to vector<16x1xf32>
    %22 = arith.addf %20, %21 : vector<16x1xf32>
    %23 = tpu.reciprocal %22 {approx = true} : vector<16x1xf32> -> vector<16x1xf32>
    %24 = arith.mulf %22, %23 : vector<16x1xf32>
    %cst_11 = arith.constant 2.000000e+00 : f32
    %25 = vector.broadcast %cst_11 : f32 to vector<16x1xf32>
    %26 = arith.subf %25, %24 : vector<16x1xf32>
    %27 = arith.mulf %23, %26 : vector<16x1xf32>
    %c0_12 = arith.constant 0 : index
    %c0_13 = arith.constant 0 : index
    %28 = vector.load %arg4[%c0_12, %c0_13] : memref<1x128xf32, #tpu.memory_space<vmem>>, vector<1x128xf32>
    %29 = vector.broadcast %13 : vector<16x1xf32> to vector<16x128xf32>
    %30 = arith.subf %6, %29 : vector<16x128xf32>
    %31 = vector.broadcast %28 : vector<1x128xf32> to vector<16x128xf32>
    %32 = arith.mulf %31, %30 : vector<16x128xf32>
    %33 = vector.broadcast %27 : vector<16x1xf32> to vector<16x128xf32>
    %34 = arith.mulf %32, %33 : vector<16x128xf32>
    %c0_14 = arith.constant 0 : index
    %c0_15 = arith.constant 0 : index
    %35 = vector.load %arg5[%c0_14, %c0_15] : memref<1x128xf32, #tpu.memory_space<vmem>>, vector<1x128xf32>
    %36 = vector.broadcast %35 : vector<1x128xf32> to vector<16x128xf32>
    %37 = arith.addf %34, %36 : vector<16x128xf32>
    %c0_16 = arith.constant 0 : index
    %c0_17 = arith.constant 0 : index
    %38 = vector.load %arg6[%c0_16, %c0_17] : memref<16x128xf32, #tpu.memory_space<vmem>>, vector<16x128xf32>
    tpu.vector_store %arg6[%c0_16, %c0_17], %37 {strides = array<i32>} : memref<16x128xf32, #tpu.memory_space<vmem>>, vector<16x128xf32>,
    return
  }
  func.func @transform_0(%arg0: i32) -> (i32, i32) {
    %c0_i32 = arith.constant 0 : i32
    %c0_i32_0 = arith.constant 0 : i32
    return %arg0, %c0_i32 : i32, i32
  }
  func.func @transform_1(%arg0: i32) -> (i32, i32) {
    %c0_i32 = arith.constant 0 : i32
    %c0_i32_0 = arith.constant 0 : i32
    %c0_i32_1 = arith.constant 0 : i32
    return %c0_i32, %c0_i32_0 : i32, i32
  }
  func.func @transform_2(%arg0: i32) -> (i32, i32) {
    %c0_i32 = arith.constant 0 : i32
    %c0_i32_0 = arith.constant 0 : i32
    %c0_i32_1 = arith.constant 0 : i32
    return %c0_i32, %c0_i32_0 : i32, i32
  }
  func.func @transform_3(%arg0: i32) -> (i32, i32) {
    %c0_i32 = arith.constant 0 : i32
    %c0_i32_0 = arith.constant 0 : i32
    %c0_i32_1 = arith.constant 0 : i32
    return %c0_i32, %c0_i32_0 : i32, i32
  }
  func.func @transform_4(%arg0: i32) -> (i32, i32) {
    %c0_i32 = arith.constant 0 : i32
    %c0_i32_0 = arith.constant 0 : i32
    %c0_i32_1 = arith.constant 0 : i32
    return %c0_i32, %c0_i32_0 : i32, i32
  }
  func.func @transform_5(%arg0: i32) -> (i32, i32) {
    %c0_i32 = arith.constant 0 : i32
    %c0_i32_0 = arith.constant 0 : i32
    return %arg0, %c0_i32 : i32, i32
  }
}

</mosaic_0001>

<llo_original>
// kernel: tpu_custom_call.1
$region0: #{tpu_custom_call.1}
  #allocation0 [shape = 'u32[]', space=smem, size = 0x4, offset = 0x4, fixed_abs, tag = 'smem constant byte address 0x4 - core index']
  #allocation1 [shape = 'u32[72,128]{1,0:T(1,128)}', space=vmem, size = 0x9000, scoped, tag = 'internal scratch']
  %s0 = inlined_call_operand.hbm [shape: f32[16,128], index: 0, kind: input, shape index: {}]
  %s1 = inlined_call_operand.hbm [shape: f32[128,128], index: 1, kind: input, shape index: {}]
  %s2 = inlined_call_operand.vmem [shape: f32[1,128], index: 2, kind: input, shape index: {}]
  %s3 = inlined_call_operand.vmem [shape: f32[1,128], index: 3, kind: input, shape index: {}]
  %s4 = inlined_call_operand.vmem [shape: f32[1,128], index: 4, kind: input, shape index: {}]
  %s5 = inlined_call_operand.hbm [shape: f32[16,128], index: 5, kind: output, shape index: {}]
  %s6 = sld [smem:[#allocation0]]
  $region38: #{tpu_custom_call.1} parent=0
    _
  %s8 = ssub.s32 1, %s6
  %s9 = scalar_select 0, %s8, %s6
  $region1: #{tpu_custom_call.1} parent=0
    #allocation2 [shape = 'u8[8192]{0}', space=vmem, size = 0x2000, scoped, tag = 'input window, operand 0, single buffered']
    #allocation3 [shape = 's32[1]{0}', space=sflag, size = 0x4, scoped, tag = 'scoped memory for tpu_custom_call.1']
    #allocation4 [shape = 's32[1]{0}', space=sflag, size = 0x4, scoped, tag = 'scoped memory for tpu_custom_call.1']
    #allocation5 [shape = 'u8[65536]{0}', space=vmem, size = 0x10000, scoped, tag = 'input window, operand 1, single buffered']
    #allocation6 [shape = 's32[1]{0}', space=sflag, size = 0x4, scoped, tag = 'scoped memory for tpu_custom_call.1']
    #allocation7 [shape = 'u8[8192]{0}', space=vmem, size = 0x2000, scoped, tag = 'output window, operand 0, single buffered']
    %10 = vsyncpa [#allocation3], 0
    %11 = vsyncpa [#allocation6], 0
    %12 = vsyncpa [#allocation4], 0
    // Predicated region
    $region2: #{tpu_custom_call.1} parent=1 // pred_check
      _
    $region3: #{tpu_custom_call.1} parent=1 // pred_check_branch
      %14 = sbr.rel (0) target = $region5
    $region4: #{tpu_custom_call.1} parent=1 // pred_region
      %16 = vsyncadd [#allocation3], 0
      %s17 = sshll.u32 %s0, 4
      %s18 = int_to_ptr.hbm [resolvable:$true] %s17
      %s19 = sshll.u32 [#allocation2], 4
      %s20 = int_to_ptr.vmem [resolvable:$true] %s19
      %25 = dma.hbm_to_vmem [thread:$0]  %s18, 256, %s20, [#allocation3], 128, 128, 8
    $region5: #{tpu_custom_call.1} parent=1 // pred_fallthru
      _
    // Predicated region
    $region6: #{tpu_custom_call.1} parent=1 // pred_check
      _
    $region7: #{tpu_custom_call.1} parent=1 // pred_check_branch
      %27 = sbr.rel (0) target = $region9
    $region8: #{tpu_custom_call.1} parent=1 // pred_region
      %29 = vsyncadd [#allocation6], 0
      %s30 = sshll.u32 %s1, 4
      %s31 = int_to_ptr.hbm [resolvable:$true] %s30
      %s32 = sshll.u32 [#allocation5], 4
      %s33 = int_to_ptr.vmem [resolvable:$true] %s32
      %38 = dma.hbm_to_vmem [thread:$0]  %s31, 2048, %s33, [#allocation6], 128, 128, 8
    $region9: #{tpu_custom_call.1} parent=1 // pred_fallthru
      _
    // Predicated region
    $region10: #{tpu_custom_call.1} parent=1 // pred_check
      _
    $region11: #{tpu_custom_call.1} parent=1 // pred_check_branch
      %40 = sbr.rel (0) target = $region13
    $region12: #{tpu_custom_call.1} parent=1 // pred_region
      _
    $region13: #{tpu_custom_call.1} parent=1 // pred_fallthru
      _
    // Predicated region
    $region14: #{tpu_custom_call.1} parent=1 // pred_check
      _
    $region15: #{tpu_custom_call.1} parent=1 // pred_check_branch
      %42 = sbr.rel (0) target = $region17
    $region16: #{tpu_custom_call.1} parent=1 // pred_region
      _
    $region17: #{tpu_custom_call.1} parent=1 // pred_fallthru
      _
    // Predicated region
    $region18: #{tpu_custom_call.1} parent=1 // pred_check
      _
    $region19: #{tpu_custom_call.1} parent=1 // pred_check_branch
      %44 = sbr.rel (0) target = $region21
    $region20: #{tpu_custom_call.1} parent=1 // pred_region
      _
    $region21: #{tpu_custom_call.1} parent=1 // pred_fallthru
      _
    // Predicated region
    $region22: #{tpu_custom_call.1} parent=1 // pred_check
      _
    $region23: #{tpu_custom_call.1} parent=1 // pred_check_branch
      %46 = sbr.rel (0) target = $region25
    $region24: #{tpu_custom_call.1} parent=1 // pred_region
      %48 = dma.done [#allocation3], 256
    $region25: #{tpu_custom_call.1} parent=1 // pred_fallthru
      _
    // Predicated region
    $region26: #{tpu_custom_call.1} parent=1 // pred_check
      _
    $region27: #{tpu_custom_call.1} parent=1 // pred_check_branch
      %50 = sbr.rel (0) target = $region29
    $region28: #{tpu_custom_call.1} parent=1 // pred_region
      %52 = dma.done [#allocation6], 2048
    $region29: #{tpu_custom_call.1} parent=1 // pred_fallthru
      _
    %v53 = vld [vmem:[#allocation2] sm:$0xff]
    %v54 = vld [vmem:[#allocation2 + $0x8] sm:$0xff]
    %v55 = vld [vmem:[#allocation5] sm:$0xff]
    %v56 = vld [vmem:[#allocation5 + $0x8] sm:$0xff]
    %v57 = vld [vmem:[#allocation5 + $0x10] sm:$0xff]
    %v58 = vld [vmem:[#allocation5 + $0x18] sm:$0xff]
    %v59 = vld [vmem:[#allocation5 + $0x20] sm:$0xff]
    %v60 = vld [vmem:[#allocation5 + $0x28] sm:$0xff]
    %v61 = vld [vmem:[#allocation5 + $0x30] sm:$0xff]
    %v62 = vld [vmem:[#allocation5 + $0x38] sm:$0xff]
    %v63 = vld [vmem:[#allocation5 + $0x40] sm:$0xff]
    %v64 = vld [vmem:[#allocation5 + $0x48] sm:$0xff]
    %v65 = vld [vmem:[#allocation5 + $0x50] sm:$0xff]
    %v66 = vld [vmem:[#allocation5 + $0x58] sm:$0xff]
    %v67 = vld [vmem:[#allocation5 + $0x60] sm:$0xff]
    %v68 = vld [vmem:[#allocation5 + $0x68] sm:$0xff]
    %v69 = vld [vmem:[#allocation5 + $0x70] sm:$0xff]
    %v70 = vld [vmem:[#allocation5 + $0x78] sm:$0xff]
    %v71 = vld [vmem:[%s2] sm:$0x1]
    %v73 = vperm.slane %v71, 0
    %75 = vmatpush.msra.mxu0 %v70
    %76 = vmatpush.msra.mxu0 %v69
    %77 = vmatpush.msra.mxu0 %v68
    %78 = vmatpush.msra.mxu0 %v67
    %79 = vmatpush.msra.mxu0 %v66
    %80 = vmatpush.msra.mxu0 %v65
    %81 = vmatpush.msra.mxu0 %v64
    %82 = vmatpush.msra.mxu0 %v63
    %83 = vmatpush.msra.mxu0 %v62
    %84 = vmatpush.msra.mxu0 %v61
    %85 = vmatpush.msra.mxu0 %v60
    %86 = vmatpush.msra.mxu0 %v59
    %87 = vmatpush.msra.mxu0 %v58
    %88 = vmatpush.msra.mxu0 %v57
    %89 = vmatpush.msra.mxu0 %v56
    %90 = vmatpush.msra.mxu0 %v55
    %91 = vmatmul.f32.gmra.mxu0 %v53
    %v92 = vpop.f32.mrf.mxu0
    %v93 = vadd.f32 %v73, %v92
    %94 = vmatmul.f32.gmra.mxu0 %v54
    %v95 = vpop.f32.mrf.mxu0
    %v96 = vadd.f32 %v73, %v95
    %97 = vdwg.mxu0
    %v98 = vadd.f32 %v53, %v93
    %v99 = vadd.f32 %v54, %v96
    %100 = vadd.xlane.f32.xlu0 %v98
    %v101 = vpop.xlane.xlu0 %100
    %102 = vadd.xlane.f32.xlu0 %v99
    %v103 = vpop.xlane.xlu0 %102
    %v104 = vmul.f32 %v98, %v98
    %v105 = vmul.f32 %v99, %v99
    %106 = vadd.xlane.f32.xlu0 %v104
    %v107 = vpop.xlane.xlu0 %106
    %108 = vadd.xlane.f32.xlu0 %v105
    %v109 = vpop.xlane.xlu0 %108
    %v110 = vmul.f32 %v101, 0.03125
    %v111 = vmul.f32 %v103, 0.03125
    %v112 = vmul.f32 %v101, %v110
    %v113 = vmul.f32 %v103, %v111
    %v114 = vsub.f32 %v107, %v112
    %v115 = vsub.f32 %v109, %v113
    %v116 = vmul.f32 %v114, 0.032258064
    %v117 = vmul.f32 %v115, 0.032258064
    %v118 = vmax.f32 %v116, 0.0
    %v119 = vmax.f32 %v117, 0.0
    %v120 = vrsqrt.pop %v118
    %v121 = vmul.f32 %v120, %v118
    %v122 = vmul.f32 %v121, %v120
    %v123 = vmul.f32 0.5, %v122
    %v124 = vsub.f32 1.5, %v123
    %v125 = vmul.f32 %v120, %v124
    %v126 = vmul.f32 %v118, %v125
    %vm127 = vcmp.eq.f32.partialorder %v118, inf
    %v128 = vsel %vm127, %v118, %v126
    %vm129 = vcmp.eq.f32.partialorder %v118, 0.0
    %v130 = vand.u32 %v118, 2147483648
    %v131 = vsel %vm129, %v130, %v128
    %v132 = vrsqrt.pop %v119
    %v133 = vmul.f32 %v132, %v119
    %v134 = vmul.f32 %v133, %v132
    %v135 = vmul.f32 0.5, %v134
    %v136 = vsub.f32 1.5, %v135
    %v137 = vmul.f32 %v132, %v136
    %v138 = vmul.f32 %v119, %v137
    %vm139 = vcmp.eq.f32.partialorder %v119, inf
    %v140 = vsel %vm139, %v119, %v138
    %vm141 = vcmp.eq.f32.partialorder %v119, 0.0
    %v142 = vand.u32 %v119, 2147483648
    %v143 = vsel %vm141, %v142, %v140
    %v144 = vadd.f32 %v131, 1e-06
    %v145 = vadd.f32 %v143, 1e-06
    %v146 = vrcp.pop %v144
    %v147 = vrcp.pop %v145
    %v148 = vmul.f32 %v144, %v146
    %v149 = vmul.f32 %v145, %v147
    %v150 = vsub.f32 2.0, %v148
    %v151 = vsub.f32 2.0, %v149
    %v152 = vmul.f32 %v146, %v150
    %v153 = vmul.f32 %v147, %v151
    %v154 = vld [vmem:[%s3] sm:$0x1]
    %v155 = vsub.f32 %v98, %v110
    %v156 = vsub.f32 %v99, %v111
    %v158 = vperm.slane %v154, 0
    %v160 = vmul.f32 %v158, %v155
    %v161 = vmul.f32 %v158, %v156
    %v162 = vmul.f32 %v160, %v152
    %v163 = vmul.f32 %v161, %v153
    %v164 = vld [vmem:[%s4] sm:$0x1]
    %v166 = vperm.slane %v164, 0
    %v168 = vadd.f32 %v162, %v166
    %v169 = vadd.f32 %v163, %v166
    %170 = vst [vmem:[#allocation7] sm:$0xff] %v168
    %171 = vst [vmem:[#allocation7 + $0x8] sm:$0xff] %v169
    // Predicated region
    $region30: #{tpu_custom_call.1} parent=1 // pred_check
      _
    $region31: #{tpu_custom_call.1} parent=1 // pred_check_branch
      %173 = sbr.rel (0) target = $region33
    $region32: #{tpu_custom_call.1} parent=1 // pred_region
      %175 = vsyncadd [#allocation4], 0
      %s176 = sshll.u32 [#allocation7], 4
      %s177 = int_to_ptr.vmem [resolvable:$true] %s176
      %s178 = sshll.u32 %s5, 4
      %s179 = int_to_ptr.hbm [resolvable:$true] %s178
      %184 = dma.vmem_to_hbm [thread:$0]  %s177, 256, %s179, [#allocation4], 128, 128, 8
    $region33: #{tpu_custom_call.1} parent=1 // pred_fallthru
      _
    // Predicated region
    $region34: #{tpu_custom_call.1} parent=1 // pred_check
      _
    $region35: #{tpu_custom_call.1} parent=1 // pred_check_branch
      %186 = sbr.rel (0) target = $region37
    $region36: #{tpu_custom_call.1} parent=1 // pred_region
      %188 = dma.done [#allocation4], 256
    $region37: #{tpu_custom_call.1} parent=1 // pred_fallthru
      _
    %189 = vsyncpa [#allocation3], 1
    %190 = vsyncpa [#allocation6], 1
    %191 = vsyncpa [#allocation4], 1

// kernel: tpu_custom_call.1
$region0: #{tpu_custom_call.1}
  #allocation0 [shape = 'u32[]', space=smem, size = 0x4, offset = 0x4, fixed_abs, tag = 'smem constant byte address 0x4 - core index']
  #allocation1 [shape = 'u32[72,128]{1,0:T(1,128)}', space=vmem, size = 0x9000, scoped, tag = 'internal scratch']
  %s0 = inlined_call_operand.hbm [shape: f32[16,128], index: 0, kind: input, shape index: {}]
  %s1 = inlined_call_operand.hbm [shape: f32[128,128], index: 1, kind: input, shape index: {}]
  %s2 = inlined_call_operand.vmem [shape: f32[1,128], index: 2, kind: input, shape index: {}]
  %s3 = inlined_call_operand.vmem [shape: f32[1,128], index: 3, kind: input, shape index: {}]
  %s4 = inlined_call_operand.vmem [shape: f32[1,128], index: 4, kind: input, shape index: {}]
  %s5 = inlined_call_operand.hbm [shape: f32[16,128], index: 5, kind: output, shape index: {}]
  %s6 = sld [smem:[#allocation0]]
  $region38: #{tpu_custom_call.1} parent=0
    _
  %s8 = ssub.s32 1, %s6
  %s9 = scalar_select 0, %s8, %s6
  $region1: #{tpu_custom_call.1} parent=0
    #allocation2 [shape = 'u8[8192]{0}', space=vmem, size = 0x2000, scoped, tag = 'input window, operand 0, single buffered']
    #allocation3 [shape = 's32[1]{0}', space=sflag, size = 0x4, scoped, tag = 'scoped memory for tpu_custom_call.1']
    #allocation4 [shape = 's32[1]{0}', space=sflag, size = 0x4, scoped, tag = 'scoped memory for tpu_custom_call.1']
    #allocation5 [shape = 'u8[65536]{0}', space=vmem, size = 0x10000, scoped, tag = 'input window, operand 1, single buffered']
    #allocation6 [shape = 's32[1]{0}', space=sflag, size = 0x4, scoped, tag = 'scoped memory for tpu_custom_call.1']
    #allocation7 [shape = 'u8[8192]{0}', space=vmem, size = 0x2000, scoped, tag = 'output window, operand 0, single buffered']
    %10 = vsyncpa [#allocation3], 0
    %11 = vsyncpa [#allocation6], 0
    %12 = vsyncpa [#allocation4], 0
    // Predicated region
    $region2: #{tpu_custom_call.1} parent=1 // pred_check
      _
    $region3: #{tpu_custom_call.1} parent=1 // pred_check_branch
      %14 = sbr.rel (0) target = $region5
    $region4: #{tpu_custom_call.1} parent=1 // pred_region
      %16 = vsyncadd [#allocation3], 0
      %s17 = sshll.u32 %s0, 4
      %s18 = int_to_ptr.hbm [resolvable:$true] %s17
      %s19 = sshll.u32 [#allocation2], 4
      %s20 = int_to_ptr.vmem [resolvable:$true] %s19
      %25 = dma.hbm_to_vmem [thread:$0]  %s18, 256, %s20, [#allocation3], 128, 128, 8
    $region5: #{tpu_custom_call.1} parent=1 // pred_fallthru
      _
    // Predicated region
    $region6: #{tpu_custom_call.1} parent=1 // pred_check
      _
    $region7: #{tpu_custom_call.1} parent=1 // pred_check_branch
      %27 = sbr.rel (0) target = $region9
    $region8: #{tpu_custom_call.1} parent=1 // pred_region
      %29 = vsyncadd [#allocation6], 0
      %s30 = sshll.u32 %s1, 4
      %s31 = int_to_ptr.hbm [resolvable:$true] %s30
      %s32 = sshll.u32 [#allocation5], 4
      %s33 = int_to_ptr.vmem [resolvable:$true] %s32
      %38 = dma.hbm_to_vmem [thread:$0]  %s31, 2048, %s33, [#allocation6], 128, 128, 8
    $region9: #{tpu_custom_call.1} parent=1 // pred_fallthru
      _
    // Predicated region
    $region10: #{tpu_custom_call.1} parent=1 // pred_check
      _
    $region11: #{tpu_custom_call.1} parent=1 // pred_check_branch
      %40 = sbr.rel (0) target = $region13
    $region12: #{tpu_custom_call.1} parent=1 // pred_region
      _
    $region13: #{tpu_custom_call.1} parent=1 // pred_fallthru
      _
    // Predicated region
    $region14: #{tpu_custom_call.1} parent=1 // pred_check
      _
    $region15: #{tpu_custom_call.1} parent=1 // pred_check_branch
      %42 = sbr.rel (0) target = $region17
    $region16: #{tpu_custom_call.1} parent=1 // pred_region
      _
    $region17: #{tpu_custom_call.1} parent=1 // pred_fallthru
      _
    // Predicated region
    $region18: #{tpu_custom_call.1} parent=1 // pred_check
      _
    $region19: #{tpu_custom_call.1} parent=1 // pred_check_branch
      %44 = sbr.rel (0) target = $region21
    $region20: #{tpu_custom_call.1} parent=1 // pred_region
      _
    $region21: #{tpu_custom_call.1} parent=1 // pred_fallthru
      _
    // Predicated region
    $region22: #{tpu_custom_call.1} parent=1 // pred_check
      _
    $region23: #{tpu_custom_call.1} parent=1 // pred_check_branch
      %46 = sbr.rel (0) target = $region25
    $region24: #{tpu_custom_call.1} parent=1 // pred_region
      %48 = dma.done [#allocation3], 256
    $region25: #{tpu_custom_call.1} parent=1 // pred_fallthru
      _
    // Predicated region
    $region26: #{tpu_custom_call.1} parent=1 // pred_check
      _
    $region27: #{tpu_custom_call.1} parent=1 // pred_check_branch
      %50 = sbr.rel (0) target = $region29
    $region28: #{tpu_custom_call.1} parent=1 // pred_region
      %52 = dma.done [#allocation6], 2048
    $region29: #{tpu_custom_call.1} parent=1 // pred_fallthru
      _
    %v53 = vld [vmem:[#allocation2] sm:$0xff]
    %v54 = vld [vmem:[#allocation2 + $0x8] sm:$0xff]
    %v55 = vld [vmem:[#allocation5] sm:$0xff]
    %v56 = vld [vmem:[#allocation5 + $0x8] sm:$0xff]
    %v57 = vld [vmem:[#allocation5 + $0x10] sm:$0xff]
    %v58 = vld [vmem:[#allocation5 + $0x18] sm:$0xff]
    %v59 = vld [vmem:[#allocation5 + $0x20] sm:$0xff]
    %v60 = vld [vmem:[#allocation5 + $0x28] sm:$0xff]
    %v61 = vld [vmem:[#allocation5 + $0x30] sm:$0xff]
    %v62 = vld [vmem:[#allocation5 + $0x38] sm:$0xff]
    %v63 = vld [vmem:[#allocation5 + $0x40] sm:$0xff]
    %v64 = vld [vmem:[#allocation5 + $0x48] sm:$0xff]
    %v65 = vld [vmem:[#allocation5 + $0x50] sm:$0xff]
    %v66 = vld [vmem:[#allocation5 + $0x58] sm:$0xff]
    %v67 = vld [vmem:[#allocation5 + $0x60] sm:$0xff]
    %v68 = vld [vmem:[#allocation5 + $0x68] sm:$0xff]
    %v69 = vld [vmem:[#allocation5 + $0x70] sm:$0xff]
    %v70 = vld [vmem:[#allocation5 + $0x78] sm:$0xff]
    %v71 = vld [vmem:[%s2] sm:$0x1]
    %v73 = vperm.slane %v71, 0
    %75 = vmatpush.msra.mxu0 %v70
    %76 = vmatpush.msra.mxu0 %v69
    %77 = vmatpush.msra.mxu0 %v68
    %78 = vmatpush.msra.mxu0 %v67
    %79 = vmatpush.msra.mxu0 %v66
    %80 = vmatpush.msra.mxu0 %v65
    %81 = vmatpush.msra.mxu0 %v64
    %82 = vmatpush.msra.mxu0 %v63
    %83 = vmatpush.msra.mxu0 %v62
    %84 = vmatpush.msra.mxu0 %v61
    %85 = vmatpush.msra.mxu0 %v60
    %86 = vmatpush.msra.mxu0 %v59
    %87 = vmatpush.msra.mxu0 %v58
    %88 = vmatpush.msra.mxu0 %v57
    %89 = vmatpush.msra.mxu0 %v56
    %90 = vmatpush.msra.mxu0 %v55
    %91 = vmatmul.f32.gmra.mxu0 %v53
    %v92 = vpop.f32.mrf.mxu0
    %v93 = vadd.f32 %v73, %v92
    %94 = vmatmul.f32.gmra.mxu0 %v54
    %v95 = vpop.f32.mrf.mxu0
    %v96 = vadd.f32 %v73, %v95
    %97 = vdwg.mxu0
    %v98 = vadd.f32 %v53, %v93
    %v99 = vadd.f32 %v54, %v96
    %100 = vadd.xlane.f32.xlu0 %v98
    %v101 = vpop.xlane.xlu0 %100
    %102 = vadd.xlane.f32.xlu0 %v99
    %v103 = vpop.xlane.xlu0 %102
    %v104 = vmul.f32 %v98, %v98
    %v105 = vmul.f32 %v99, %v99
    %106 = vadd.xlane.f32.xlu0 %v104
    %v107 = vpop.xlane.xlu0 %106
    %108 = vadd.xlane.f32.xlu0 %v105
    %v109 = vpop.xlane.xlu0 %108
    %v110 = vmul.f32 %v101, 0.03125
    %v111 = vmul.f32 %v103, 0.03125
    %v112 = vmul.f32 %v101, %v110
    %v113 = vmul.f32 %v103, %v111
    %v114 = vsub.f32 %v107, %v112
    %v115 = vsub.f32 %v109, %v113
    %v116 = vmul.f32 %v114, 0.032258064
    %v117 = vmul.f32 %v115, 0.032258064
    %v118 = vmax.f32 %v116, 0.0
    %v119 = vmax.f32 %v117, 0.0
    %v120 = vrsqrt.pop %v118
    %v121 = vmul.f32 %v120, %v118
    %v122 = vmul.f32 %v121, %v120
    %v123 = vmul.f32 0.5, %v122
    %v124 = vsub.f32 1.5, %v123
    %v125 = vmul.f32 %v120, %v124
    %v126 = vmul.f32 %v118, %v125
    %vm127 = vcmp.eq.f32.partialorder %v118, inf
    %v128 = vsel %vm127, %v118, %v126
    %vm129 = vcmp.eq.f32.partialorder %v118, 0.0
    %v130 = vand.u32 %v118, 2147483648
    %v131 = vsel %vm129, %v130, %v128
    %v132 = vrsqrt.pop %v119
    %v133 = vmul.f32 %v132, %v119
    %v134 = vmul.f32 %v133, %v132
    %v135 = vmul.f32 0.5, %v134
    %v136 = vsub.f32 1.5, %v135
    %v137 = vmul.f32 %v132, %v136
    %v138 = vmul.f32 %v119, %v137
    %vm139 = vcmp.eq.f32.partialorder %v119, inf
    %v140 = vsel %vm139, %v119, %v138
    %vm141 = vcmp.eq.f32.partialorder %v119, 0.0
    %v142 = vand.u32 %v119, 2147483648
    %v143 = vsel %vm141, %v142, %v140
    %v144 = vadd.f32 %v131, 1e-06
    %v145 = vadd.f32 %v143, 1e-06
    %v146 = vrcp.pop %v144
    %v147 = vrcp.pop %v145
    %v148 = vmul.f32 %v144, %v146
    %v149 = vmul.f32 %v145, %v147
    %v150 = vsub.f32 2.0, %v148
    %v151 = vsub.f32 2.0, %v149
    %v152 = vmul.f32 %v146, %v150
    %v153 = vmul.f32 %v147, %v151
    %v154 = vld [vmem:[%s3] sm:$0x1]
    %v155 = vsub.f32 %v98, %v110
    %v156 = vsub.f32 %v99, %v111
    %v158 = vperm.slane %v154, 0
    %v160 = vmul.f32 %v158, %v155
    %v161 = vmul.f32 %v158, %v156
    %v162 = vmul.f32 %v160, %v152
    %v163 = vmul.f32 %v161, %v153
    %v164 = vld [vmem:[%s4] sm:$0x1]
    %v166 = vperm.slane %v164, 0
    %v168 = vadd.f32 %v162, %v166
    %v169 = vadd.f32 %v163, %v166
    %170 = vst [vmem:[#allocation7] sm:$0xff] %v168
    %171 = vst [vmem:[#allocation7 + $0x8] sm:$0xff] %v169
    // Predicated region
    $region30: #{tpu_custom_call.1} parent=1 // pred_check
      _
    $region31: #{tpu_custom_call.1} parent=1 // pred_check_branch
      %173 = sbr.rel (0) target = $region33
    $region32: #{tpu_custom_call.1} parent=1 // pred_region
      %175 = vsyncadd [#allocation4], 0
      %s176 = sshll.u32 [#allocation7], 4
      %s177 = int_to_ptr.vmem [resolvable:$true] %s176
      %s178 = sshll.u32 %s5, 4
      %s179 = int_to_ptr.hbm [resolvable:$true] %s178
      %184 = dma.vmem_to_hbm [thread:$0]  %s177, 256, %s179, [#allocation4], 128, 128, 8
    $region33: #{tpu_custom_call.1} parent=1 // pred_fallthru
      _
    // Predicated region
    $region34: #{tpu_custom_call.1} parent=1 // pred_check
      _
    $region35: #{tpu_custom_call.1} parent=1 // pred_check_branch
      %186 = sbr.rel (0) target = $region37
    $region36: #{tpu_custom_call.1} parent=1 // pred_region
      %188 = dma.done [#allocation4], 256
    $region37: #{tpu_custom_call.1} parent=1 // pred_fallthru
      _
    %189 = vsyncpa [#allocation3], 1
    %190 = vsyncpa [#allocation6], 1
    %191 = vsyncpa [#allocation4], 1

</llo_original>
